<compile_context>
chip_gen: v5e
topology: v5e:2x2
jax: 0.10.0
libtpu: 0.0.40
codegen_flags: <defaults>
</compile_context>

<pallas_src>
import functools

import jax
import jax.numpy as jnp
from jax import lax
from jax.experimental import pallas as pl
from jax.experimental.pallas import tpu as pltpu


# ----------------------------------------------------------------------------
# Pass 1: per-row running mean / var of x[0]  ->  fused scale / shift.
# ----------------------------------------------------------------------------
def _stats_core(src_ref, scale_ref, shift_ref, mean_ref, var_ref, *,
                alpha, beta, eps, col):
    """src_ref: (c_blk, r_tile) column-major slice of x[0] (columns on sublanes,
    rows on lanes).  Runs the module's serial per-column recurrence, carrying
    mean/var in VMEM scratch across the 'arbitrary' C grid axis."""
    c_idx = pl.program_id(1)
    c_blk = src_ref.shape[0]            # columns of x[0] handled this grid step

    @pl.when(c_idx == 0)
    def _init():
        mean_ref[...] = jnp.zeros_like(mean_ref)
        var_ref[...] = jnp.zeros_like(var_ref)

    mean = mean_ref[...]
    var = var_ref[...]
    col_base = c_idx * c_blk            # global (0-indexed) first column here

    n_chunks = c_blk // 8               # aligned 8-sublane loads

    def chunk_body(j, carry):
        mean, var = carry
        base = pl.multiple_of(j * 8, 8)
        chunk = src_ref[pl.ds(base, 8), :].astype(jnp.float32)   # (8, r_tile)
        for i in range(8):              # static unroll: full chain visible to LLO
            d = chunk[i:i + 1, :]       # == x[0, :, col_base + j*8 + i]
            k = col_base + j * 8 + (i + 1)                # 1-indexed divisor
            inv = 1.0 / k.astype(jnp.float32)             # scalar recip, off-chain
            mean = (mean + d) * inv
            var = var + jnp.square(d - mean)              # uses the *updated* mean
        return mean, var

    if n_chunks > 0:
        mean, var = lax.fori_loop(0, n_chunks, chunk_body, (mean, var))

    for t in range(n_chunks * 8, c_blk):   # static tail (<8 cols; only if c_blk == C)
        d = src_ref[t:t + 1, :].astype(jnp.float32)
        k = col_base + (t + 1)
        inv = 1.0 / k.astype(jnp.float32)
        mean = (mean + d) * inv
        var = var + jnp.square(d - mean)

    mean_ref[...] = mean
    var_ref[...] = var

    @pl.when(c_idx == pl.num_programs(1) - 1)
    def _finalize():
        # True division by (col - 1), like the module (col == 1 -> inf/nan).
        v = var / jnp.float32(col - 1)
        scale = jnp.float32(alpha) / jnp.sqrt(v + jnp.float32(eps))
        scale_ref[...] = scale
        shift_ref[...] = jnp.float32(beta) - mean * scale


def _stats_kernel_natural(x_ref, scale_ref, shift_ref, xt_ref, mean_ref, var_ref, *,
                          alpha, beta, eps, col):
    # x_ref: (r_tile, c_blk) natural-layout slice of x[0] (batch dim squeezed).
    # Transpose 128-column slabs on-chip (XLU is idle here), eliminating the
    # stand-alone XLA transpose of x[0] and its extra HBM round trip.
    # Both dims are multiples of 128 on this path (see wrapper gate).
    c_blk = x_ref.shape[1]
    for s in range(c_blk // 128):
        lo = s * 128
        xt_ref[lo:lo + 128, :] = jnp.transpose(
            x_ref[:, lo:lo + 128].astype(jnp.float32))
    _stats_core(xt_ref, scale_ref, shift_ref, mean_ref, var_ref,
                alpha=alpha, beta=beta, eps=eps, col=col)


def _stats_kernel_pretransposed(x0t_ref, scale_ref, shift_ref, mean_ref, var_ref, *,
                                alpha, beta, eps, col):
    # x0t_ref: (c_blk, r_tile) slice of x[0].T (host-transpose fallback for
    # non-128-aligned shapes, where the transposed tensor is tiny anyway).
    _stats_core(x0t_ref, scale_ref, shift_ref, mean_ref, var_ref,
                alpha=alpha, beta=beta, eps=eps, col=col)


# ----------------------------------------------------------------------------
# Pass 2: streaming normalize (HBM-bound, one FMA per element).
# ----------------------------------------------------------------------------
def _normalize_kernel(x_ref, scale_ref, shift_ref, out_ref):
    # x_ref: (tr, tc) block (batch axis squeezed); scale/shift: (tr, 1),
    # broadcast along the lane (C) axis.
    x = x_ref[...].astype(jnp.float32)
    out_ref[...] = (x * scale_ref[...] + shift_ref[...]).astype(out_ref.dtype)


def _vmem_limit_bytes():
    """Per-generation VMEM budget: ~3/4 of physical (v5e/v6e: 96 MiB, v7x: 48 MiB)."""
    try:
        cap = int(pltpu.get_tpu_info().vmem_capacity_bytes)
    except Exception:
        cap = 64 * 1024 * 1024          # conservative default (v7x per-core VMEM)
    return int(min(cap * 3 // 4, 96 * 1024 * 1024))


def layernorm_v2(x, alpha, beta, eps=1e-5):
    """x: (B, row, col) — same axis convention as the PyTorch module."""
    B, R, C = x.shape
    vmem_limit = _vmem_limit_bytes()

    # ---------------------------------------------------------------- pass 1
    natural = (R % 128 == 0) and (C % 128 == 0)   # in-kernel-transpose path
    r_tile = R if R <= 1024 else 1024             # rows on lanes; vreg-pressure bound

    if natural:
        c_tile = C if C <= 512 else next(t for t in (512, 256, 128) if C % t == 0)
    elif C <= 2048:
        c_tile = C
    else:
        c_tile = next((t for t in (2048, 1024, 512, 256, 128) if C % t == 0), C)
        # TODO(synk): very large C that is not a multiple of 128 still runs as a
        # single (C, r_tile) block; tile it with in-kernel masking if ever needed.

    nr, nc = pl.cdiv(R, r_tile), pl.cdiv(C, c_tile)
    stats_out_shape = (jax.ShapeDtypeStruct((1, R), jnp.float32),
                       jax.ShapeDtypeStruct((1, R), jnp.float32))
    stats_out_specs = [pl.BlockSpec((1, r_tile), lambda i, c: (0, i)),
                       pl.BlockSpec((1, r_tile), lambda i, c: (0, i))]
    carry_scratch = [pltpu.VMEM((1, r_tile), jnp.float32),
                     pltpu.VMEM((1, r_tile), jnp.float32)]
    stats_params = pltpu.CompilerParams(
        dimension_semantics=("parallel", "arbitrary"),
        vmem_limit_bytes=vmem_limit)

    if natural:
        # Reads x[0]'s blocks straight out of x (no XLA slice / transpose).
        scale_1r, shift_1r = pl.pallas_call(
            functools.partial(_stats_kernel_natural, alpha=float(alpha),
                              beta=float(beta), eps=float(eps), col=C),
            out_shape=stats_out_shape,
            grid_spec=pltpu.PrefetchScalarGridSpec(
                num_scalar_prefetch=0,
                grid=(nr, nc),
                in_specs=[pl.BlockSpec((pl.Squeezed(), r_tile, c_tile),
                                       lambda i, c: (0, i, c))],
                out_specs=stats_out_specs,
                scratch_shapes=[pltpu.VMEM((c_tile, r_tile), jnp.float32)]
                               + carry_scratch),
            compiler_params=stats_params,
        )(x)
    else:
        x0t = x[0].T                    # tiny for the non-128-aligned shapes
        scale_1r, shift_1r = pl.pallas_call(
            functools.partial(_stats_kernel_pretransposed, alpha=float(alpha),
                              beta=float(beta), eps=float(eps), col=C),
            out_shape=stats_out_shape,
            grid_spec=pltpu.PrefetchScalarGridSpec(
                num_scalar_prefetch=0,
                grid=(nr, nc),
                in_specs=[pl.BlockSpec((c_tile, r_tile), lambda i, c: (c, i))],
                out_specs=stats_out_specs,
                scratch_shapes=carry_scratch),
            compiler_params=stats_params,
        )(x0t)

    # Rows onto sublanes for the streaming pass (R floats -> negligible relayout).
    scale = jnp.reshape(scale_1r, (R, 1))
    shift = jnp.reshape(shift_1r, (R, 1))

    # ---------------------------------------------------------------- pass 2
    # Lane-dense full-C rows whenever the double-buffered in+out blocks fit the
    # per-generation budget; otherwise fall back to tiling C at 128-multiples.
    blk_budget = (vmem_limit * 7) // 10          # in+out, x2 buffers, f32 worst case
    if 2 * 2 * 8 * C * 4 <= blk_budget:
        tc = C
        tr_fit = (blk_budget // (2 * 2 * C * 4)) // 8 * 8
        tr = R if R <= tr_fit else tr_fit
    else:
        tr = 8
        tc = max(128, (blk_budget // (2 * 2 * 8 * 4)) // 128 * 128)

    nb, nrr, ncc = B, pl.cdiv(R, tr), pl.cdiv(C, tc)
    # Put the largest independent axis first so megacore (v7x) splits real work.
    if nrr >= nb:
        grid2 = (nrr, nb, ncc)
        x_map = lambda i, b, j: (b, i, j)
        s_map = lambda i, b, j: (i, 0)
    else:
        grid2 = (nb, nrr, ncc)
        x_map = lambda b, i, j: (b, i, j)
        s_map = lambda b, i, j: (i, 0)

    out = pl.pallas_call(
        _normalize_kernel,
        out_shape=jax.ShapeDtypeStruct((B, R, C), x.dtype),
        grid_spec=pltpu.PrefetchScalarGridSpec(
            num_scalar_prefetch=0,
            grid=grid2,
            in_specs=[pl.BlockSpec((pl.Squeezed(), tr, tc), x_map),
                      pl.BlockSpec((tr, 1), s_map),
                      pl.BlockSpec((tr, 1), s_map)],
            out_specs=pl.BlockSpec((pl.Squeezed(), tr, tc), x_map),
        ),
        compiler_params=pltpu.CompilerParams(
            dimension_semantics=("parallel", "parallel", "parallel"),
            vmem_limit_bytes=vmem_limit),
    )(x, scale, shift)
    return out


def _reference(x, alpha, beta, eps):
    """Pure-JAX transcription of the PyTorch forward, for verification."""
    x = jnp.asarray(x, jnp.float32)
    _, R, C = x.shape
    x0 = x[0]  # (R, C)
    mean = jnp.zeros((R,), jnp.float32)
    var = jnp.zeros((R,), jnp.float32)
    for k in range(C):
        d = x0[:, k]
        mean = (mean + d) / (k + 1)
        var = var + jnp.square(d - mean)
    var = var / (C - 1)
    mean = mean[:, None]
    var = var[:, None]
    return alpha * (x - mean) / jnp.sqrt(var + eps) + beta


if __name__ == "__main__":
    key = jax.random.PRNGKey(0)
    # Small 3-D input consistent with forward(): (batch=2, row=8, col=16)
    x = jax.random.normal(key, (2, 8, 16), dtype=jnp.float32)

    # Deterministic "parameters" from __init__ (plain scalars, not nn.Parameter).
    alpha, beta, eps = 0.5, 0.25, 1e-5

    out = layernorm_v2(x, alpha, beta, eps)
    out = jax.block_until_ready(out)

    ref = _reference(x, alpha, beta, eps)
    assert out.shape == x.shape and out.dtype == x.dtype
    assert jnp.allclose(out, ref, atol=1e-5, rtol=1e-5), "mismatch vs reference"

    print("KERNEL_OK")
</pallas_src>

<mosaic_0001>
module attributes {stable_mosaic.version = 11 : i64} {
  func.func @_stats_kernel_pretransposed(%arg0: i32, %arg1: i32, %arg2: memref<16x8xf32, #tpu.memory_space<vmem>>, %arg3: memref<1x8xf32, #tpu.memory_space<vmem>>, %arg4: memref<1x8xf32, #tpu.memory_space<vmem>>, %arg5: memref<1x8xf32, #tpu.memory_space<vmem>>, %arg6: memref<1x8xf32, #tpu.memory_space<vmem>>) attributes {dimension_semantics = [#tpu.dimension_semantics<parallel>, #tpu.dimension_semantics<arbitrary>], iteration_bounds = array<i64: 1, 1>, scalar_prefetch = 0 : i64, scratch_operands = 2 : i64, tpu.core_type = #tpu.core_type<tc>, window_params = [{transform_indices = @transform_0, window_bounds = array<i64: 16, 8>}, {transform_indices = @transform_1, window_bounds = array<i64: 1, 8>}, {transform_indices = @transform_2, window_bounds = array<i64: 1, 8>}]} {
    %c0_i32 = arith.constant 0 : i32
    %0 = arith.cmpi eq, %arg1, %c0_i32 : i32
    %1 = arith.extui %0 : i1 to i32
    %c0_i32_0 = arith.constant 0 : i32
    %2 = arith.cmpi ne, %1, %c0_i32_0 : i32
    scf.if %2 {
      %cst = arith.constant 0.000000e+00 : f32
      %13 = vector.broadcast %cst : f32 to vector<1x8xf32>
      %c0_12 = arith.constant 0 : index
      %c0_13 = arith.constant 0 : index
      %14 = vector.load %arg5[%c0_12, %c0_13] : memref<1x8xf32, #tpu.memory_space<vmem>>, vector<1x8xf32>
      tpu.vector_store %arg5[%c0_12, %c0_13], %13 {strides = array<i32>} : memref<1x8xf32, #tpu.memory_space<vmem>>, vector<1x8xf32>,
      %cst_14 = arith.constant 0.000000e+00 : f32
      %15 = vector.broadcast %cst_14 : f32 to vector<1x8xf32>
      %c0_15 = arith.constant 0 : index
      %c0_16 = arith.constant 0 : index
      %16 = vector.load %arg6[%c0_15, %c0_16] : memref<1x8xf32, #tpu.memory_space<vmem>>, vector<1x8xf32>
      tpu.vector_store %arg6[%c0_15, %c0_16], %15 {strides = array<i32>} : memref<1x8xf32, #tpu.memory_space<vmem>>, vector<1x8xf32>,
    } else {
    }
    %c0 = arith.constant 0 : index
    %c0_1 = arith.constant 0 : index
    %3 = vector.load %arg5[%c0, %c0_1] : memref<1x8xf32, #tpu.memory_space<vmem>>, vector<1x8xf32>
    %c0_2 = arith.constant 0 : index
    %c0_3 = arith.constant 0 : index
    %4 = vector.load %arg6[%c0_2, %c0_3] : memref<1x8xf32, #tpu.memory_space<vmem>>, vector<1x8xf32>
    %c16_i32 = arith.constant 16 : i32
    %5 = arith.muli %arg1, %c16_i32 : i32
    %c0_i32_4 = arith.constant 0 : i32
    %c2_i32 = arith.constant 2 : i32
    %6 = arith.addi %c0_i32_4, %c2_i32 : i32
    %c1_i32 = arith.constant 1 : i32
    %7:2 = scf.for %arg7 = %c0_i32_4 to %6 step %c1_i32 iter_args(%arg8 = %3, %arg9 = %4) -> (vector<1x8xf32>, vector<1x8xf32>)  : i32 {
      %c8_i32 = arith.constant 8 : i32
      %13 = arith.muli %arg7, %c8_i32 : i32
      %14 = tpu.assume_multiple %13, 8 : i32
      %15 = arith.index_cast %14 : i32 to index
      %c0_12 = arith.constant 0 : index
      %16 = vector.load %arg2[%15, %c0_12] : memref<16x8xf32, #tpu.memory_space<vmem>>, vector<8x8xf32>
      %17 = vector.extract_strided_slice %16 {offsets = [0, 0], sizes = [1, 8], strides = [1, 1]} : vector<8x8xf32> to vector<1x8xf32>
      %c8_i32_13 = arith.constant 8 : i32
      %18 = arith.muli %arg7, %c8_i32_13 : i32
      %19 = arith.addi %5, %18 : i32
      %c1_i32_14 = arith.constant 1 : i32
      %20 = arith.addi %19, %c1_i32_14 : i32
      %21 = arith.sitofp %20 : i32 to f32
      %cst = arith.constant 1.000000e+00 : f32
      %22 = arith.divf %cst, %21 : f32
      %23 = arith.addf %arg8, %17 : vector<1x8xf32>
      %24 = vector.broadcast %22 : f32 to vector<1x8xf32>
      %25 = arith.mulf %23, %24 : vector<1x8xf32>
      %26 = arith.subf %17, %25 : vector<1x8xf32>
      %27 = arith.mulf %26, %26 : vector<1x8xf32>
      %28 = arith.addf %arg9, %27 : vector<1x8xf32>
      %29 = vector.extract_strided_slice %16 {offsets = [1, 0], sizes = [1, 8], strides = [1, 1]} : vector<8x8xf32> to vector<1x8xf32>
      %c8_i32_15 = arith.constant 8 : i32
      %30 = arith.muli %arg7, %c8_i32_15 : i32
      %31 = arith.addi %5, %30 : i32
      %c2_i32_16 = arith.constant 2 : i32
      %32 = arith.addi %31, %c2_i32_16 : i32
      %33 = arith.sitofp %32 : i32 to f32
      %cst_17 = arith.constant 1.000000e+00 : f32
      %34 = arith.divf %cst_17, %33 : f32
      %35 = arith.addf %25, %29 : vector<1x8xf32>
      %36 = vector.broadcast %34 : f32 to vector<1x8xf32>
      %37 = arith.mulf %35, %36 : vector<1x8xf32>
      %38 = arith.subf %29, %37 : vector<1x8xf32>
      %39 = arith.mulf %38, %38 : vector<1x8xf32>
      %40 = arith.addf %28, %39 : vector<1x8xf32>
      %41 = vector.extract_strided_slice %16 {offsets = [2, 0], sizes = [1, 8], strides = [1, 1]} : vector<8x8xf32> to vector<1x8xf32>
      %c8_i32_18 = arith.constant 8 : i32
      %42 = arith.muli %arg7, %c8_i32_18 : i32
      %43 = arith.addi %5, %42 : i32
      %c3_i32 = arith.constant 3 : i32
      %44 = arith.addi %43, %c3_i32 : i32
      %45 = arith.sitofp %44 : i32 to f32
      %cst_19 = arith.constant 1.000000e+00 : f32
      %46 = arith.divf %cst_19, %45 : f32
      %47 = arith.addf %37, %41 : vector<1x8xf32>
      %48 = vector.broadcast %46 : f32 to vector<1x8xf32>
      %49 = arith.mulf %47, %48 : vector<1x8xf32>
      %50 = arith.subf %41, %49 : vector<1x8xf32>
      %51 = arith.mulf %50, %50 : vector<1x8xf32>
      %52 = arith.addf %40, %51 : vector<1x8xf32>
      %53 = vector.extract_strided_slice %16 {offsets = [3, 0], sizes = [1, 8], strides = [1, 1]} : vector<8x8xf32> to vector<1x8xf32>
      %c8_i32_20 = arith.constant 8 : i32
      %54 = arith.muli %arg7, %c8_i32_20 : i32
      %55 = arith.addi %5, %54 : i32
      %c4_i32 = arith.constant 4 : i32
      %56 = arith.addi %55, %c4_i32 : i32
      %57 = arith.sitofp %56 : i32 to f32
      %cst_21 = arith.constant 1.000000e+00 : f32
      %58 = arith.divf %cst_21, %57 : f32
      %59 = arith.addf %49, %53 : vector<1x8xf32>
      %60 = vector.broadcast %58 : f32 to vector<1x8xf32>
      %61 = arith.mulf %59, %60 : vector<1x8xf32>
      %62 = arith.subf %53, %61 : vector<1x8xf32>
      %63 = arith.mulf %62, %62 : vector<1x8xf32>
      %64 = arith.addf %52, %63 : vector<1x8xf32>
      %65 = vector.extract_strided_slice %16 {offsets = [4, 0], sizes = [1, 8], strides = [1, 1]} : vector<8x8xf32> to vector<1x8xf32>
      %c8_i32_22 = arith.constant 8 : i32
      %66 = arith.muli %arg7, %c8_i32_22 : i32
      %67 = arith.addi %5, %66 : i32
      %c5_i32 = arith.constant 5 : i32
      %68 = arith.addi %67, %c5_i32 : i32
      %69 = arith.sitofp %68 : i32 to f32
      %cst_23 = arith.constant 1.000000e+00 : f32
      %70 = arith.divf %cst_23, %69 : f32
      %71 = arith.addf %61, %65 : vector<1x8xf32>
      %72 = vector.broadcast %70 : f32 to vector<1x8xf32>
      %73 = arith.mulf %71, %72 : vector<1x8xf32>
      %74 = arith.subf %65, %73 : vector<1x8xf32>
      %75 = arith.mulf %74, %74 : vector<1x8xf32>
      %76 = arith.addf %64, %75 : vector<1x8xf32>
      %77 = vector.extract_strided_slice %16 {offsets = [5, 0], sizes = [1, 8], strides = [1, 1]} : vector<8x8xf32> to vector<1x8xf32>
      %c8_i32_24 = arith.constant 8 : i32
      %78 = arith.muli %arg7, %c8_i32_24 : i32
      %79 = arith.addi %5, %78 : i32
      %c6_i32 = arith.constant 6 : i32
      %80 = arith.addi %79, %c6_i32 : i32
      %81 = arith.sitofp %80 : i32 to f32
      %cst_25 = arith.constant 1.000000e+00 : f32
      %82 = arith.divf %cst_25, %81 : f32
      %83 = arith.addf %73, %77 : vector<1x8xf32>
      %84 = vector.broadcast %82 : f32 to vector<1x8xf32>
      %85 = arith.mulf %83, %84 : vector<1x8xf32>
      %86 = arith.subf %77, %85 : vector<1x8xf32>
      %87 = arith.mulf %86, %86 : vector<1x8xf32>
      %88 = arith.addf %76, %87 : vector<1x8xf32>
      %89 = vector.extract_strided_slice %16 {offsets = [6, 0], sizes = [1, 8], strides = [1, 1]} : vector<8x8xf32> to vector<1x8xf32>
      %c8_i32_26 = arith.constant 8 : i32
      %90 = arith.muli %arg7, %c8_i32_26 : i32
      %91 = arith.addi %5, %90 : i32
      %c7_i32 = arith.constant 7 : i32
      %92 = arith.addi %91, %c7_i32 : i32
      %93 = arith.sitofp %92 : i32 to f32
      %cst_27 = arith.constant 1.000000e+00 : f32
      %94 = arith.divf %cst_27, %93 : f32
      %95 = arith.addf %85, %89 : vector<1x8xf32>
      %96 = vector.broadcast %94 : f32 to vector<1x8xf32>
      %97 = arith.mulf %95, %96 : vector<1x8xf32>
      %98 = arith.subf %89, %97 : vector<1x8xf32>
      %99 = arith.mulf %98, %98 : vector<1x8xf32>
      %100 = arith.addf %88, %99 : vector<1x8xf32>
      %101 = vector.extract_strided_slice %16 {offsets = [7, 0], sizes = [1, 8], strides = [1, 1]} : vector<8x8xf32> to vector<1x8xf32>
      %c8_i32_28 = arith.constant 8 : i32
      %102 = arith.muli %arg7, %c8_i32_28 : i32
      %103 = arith.addi %5, %102 : i32
      %c8_i32_29 = arith.constant 8 : i32
      %104 = arith.addi %103, %c8_i32_29 : i32
      %105 = arith.sitofp %104 : i32 to f32
      %cst_30 = arith.constant 1.000000e+00 : f32
      %106 = arith.divf %cst_30, %105 : f32
      %107 = arith.addf %97, %101 : vector<1x8xf32>
      %108 = vector.broadcast %106 : f32 to vector<1x8xf32>
      %109 = arith.mulf %107, %108 : vector<1x8xf32>
      %110 = arith.subf %101, %109 : vector<1x8xf32>
      %111 = arith.mulf %110, %110 : vector<1x8xf32>
      %112 = arith.addf %100, %111 : vector<1x8xf32>
      scf.yield %109, %112 : vector<1x8xf32>, vector<1x8xf32>
    }
    %c2_i32_5 = arith.constant 2 : i32
    %c0_6 = arith.constant 0 : index
    %c0_7 = arith.constant 0 : index
    %8 = vector.load %arg5[%c0_6, %c0_7] : memref<1x8xf32, #tpu.memory_space<vmem>>, vector<1x8xf32>
    tpu.vector_store %arg5[%c0_6, %c0_7], %7#0 {strides = array<i32>} : memref<1x8xf32, #tpu.memory_space<vmem>>, vector<1x8xf32>,
    %c0_8 = arith.constant 0 : index
    %c0_9 = arith.constant 0 : index
    %9 = vector.load %arg6[%c0_8, %c0_9] : memref<1x8xf32, #tpu.memory_space<vmem>>, vector<1x8xf32>
    tpu.vector_store %arg6[%c0_8, %c0_9], %7#1 {strides = array<i32>} : memref<1x8xf32, #tpu.memory_space<vmem>>, vector<1x8xf32>,
    %c0_i32_10 = arith.constant 0 : i32
    %10 = arith.cmpi eq, %arg1, %c0_i32_10 : i32
    %11 = arith.extui %10 : i1 to i32
    %c0_i32_11 = arith.constant 0 : i32
    %12 = arith.cmpi ne, %11, %c0_i32_11 : i32
    scf.if %12 {
      %cst = arith.constant 1.500000e+01 : f32
      %13 = vector.broadcast %cst : f32 to vector<1x8xf32>
      %14 = arith.divf %7#1, %13 : vector<1x8xf32>
      %cst_12 = arith.constant 9.99999974E-6 : f32
      %15 = vector.broadcast %cst_12 : f32 to vector<1x8xf32>
      %16 = arith.addf %14, %15 : vector<1x8xf32>
      %17 = math.sqrt %16 : vector<1x8xf32>
      %cst_13 = arith.constant 5.000000e-01 : f32
      %18 = vector.broadcast %cst_13 : f32 to vector<1x8xf32>
      %19 = arith.divf %18, %17 : vector<1x8xf32>
      %c0_14 = arith.constant 0 : index
      %c0_15 = arith.constant 0 : index
      %20 = vector.load %arg3[%c0_14, %c0_15] : memref<1x8xf32, #tpu.memory_space<vmem>>, vector<1x8xf32>
      tpu.vector_store %arg3[%c0_14, %c0_15], %19 {strides = array<i32>} : memref<1x8xf32, #tpu.memory_space<vmem>>, vector<1x8xf32>,
      %21 = arith.mulf %7#0, %19 : vector<1x8xf32>
      %cst_16 = arith.constant 2.500000e-01 : f32
      %22 = vector.broadcast %cst_16 : f32 to vector<1x8xf32>
      %23 = arith.subf %22, %21 : vector<1x8xf32>
      %c0_17 = arith.constant 0 : index
      %c0_18 = arith.constant 0 : index
      %24 = vector.load %arg4[%c0_17, %c0_18] : memref<1x8xf32, #tpu.memory_space<vmem>>, vector<1x8xf32>
      tpu.vector_store %arg4[%c0_17, %c0_18], %23 {strides = array<i32>} : memref<1x8xf32, #tpu.memory_space<vmem>>, vector<1x8xf32>,
    } else {
    }
    return
  }
  func.func @transform_0(%arg0: i32, %arg1: i32) -> (i32, i32) {
    %c0_i32 = arith.constant 0 : i32
    return %arg1, %arg0 : i32, i32
  }
  func.func @transform_1(%arg0: i32, %arg1: i32) -> (i32, i32) {
    %c0_i32 = arith.constant 0 : i32
    %c0_i32_0 = arith.constant 0 : i32
    return %c0_i32, %arg0 : i32, i32
  }
  func.func @transform_2(%arg0: i32, %arg1: i32) -> (i32, i32) {
    %c0_i32 = arith.constant 0 : i32
    %c0_i32_0 = arith.constant 0 : i32
    return %c0_i32, %arg0 : i32, i32
  }
}

</mosaic_0001>

<llo_original>
// kernel: tpu_custom_call.1
$region0: #{tpu_custom_call.1}
  #allocation0 [shape = 'u32[]', space=smem, size = 0x4, offset = 0x4, fixed_abs, tag = 'smem constant byte address 0x4 - core index']
  #allocation1 [shape = 'u32[72,128]{1,0:T(1,128)}', space=vmem, size = 0x9000, scoped, tag = 'internal scratch']
  #allocation2 [shape = 'f32[1,8]{1,0:T(1,128)}', space=vmem, size = 0x200, scoped, tag = 'scratch operand']
  #allocation3 [shape = 'f32[1,8]{1,0:T(1,128)}', space=vmem, size = 0x200, scoped, tag = 'scratch operand']
  %s0 = inlined_call_operand.vmem [shape: f32[16,8], index: 0, kind: input, shape index: {}]
  %s1 = inlined_call_operand.hbm [shape: f32[1,8], index: 1, kind: output, shape index: {0}]
  %s2 = inlined_call_operand.hbm [shape: f32[1,8], index: 2, kind: output, shape index: {1}]
  %3 = xla_tuple %s1, %s2
  %s4 = sld [smem:[#allocation0]]
  $region37: #{tpu_custom_call.1} parent=0
    _
  %s6 = ssub.s32 1, %s4
  %s7 = scalar_select 0, %s6, %s4
  $region1: #{tpu_custom_call.1} parent=0
    #allocation4 [shape = 'u8[512]{0}', space=vmem, size = 0x400, scoped, tag = 'output window, operand 0, single buffered']
    #allocation5 [shape = 's32[1]{0}', space=sflag, size = 0x4, scoped, tag = 'scoped memory for tpu_custom_call.1']
    #allocation6 [shape = 'u8[512]{0}', space=vmem, size = 0x400, scoped, tag = 'output window, operand 1, single buffered']
    #allocation7 [shape = 's32[1]{0}', space=sflag, size = 0x4, scoped, tag = 'scoped memory for tpu_custom_call.1']
    %8 = vsyncpa [#allocation5], 0
    %9 = vsyncpa [#allocation7], 0
    // Predicated region
    $region2: #{tpu_custom_call.1} parent=1 // pred_check
      _
    $region3: #{tpu_custom_call.1} parent=1 // pred_check_branch
      %11 = sbr.rel (0) target = $region5
    $region4: #{tpu_custom_call.1} parent=1 // pred_region
      _
    $region5: #{tpu_custom_call.1} parent=1 // pred_fallthru
      _
    %p12 = scmp.eq.s32.totalorder 0, 0
    // Predicated region
    $region6: #{tpu_custom_call.1} parent=1 // pred_check
      %p13 = pneg %p12
    $region7: #{tpu_custom_call.1} parent=1 // pred_check_branch
      %15 = sbr.rel (%p13) target = $region9
    $region8: #{tpu_custom_call.1} parent=1 // pred_region
      %vm16 = vcmask 57344
      %17 = vst.msk [vmem:[#allocation2] sm:$0x1] %vm16, 0.0
      %18 = vst.msk [vmem:[#allocation3] sm:$0x1] %vm16, 0.0
    $region9: #{tpu_custom_call.1} parent=1 // pred_fallthru
      _
    %v19 = vld [vmem:[#allocation2] sm:$0x1]
    %v20 = vld [vmem:[#allocation3] sm:$0x1]
    %s21 = smul.u32 0, 16
    loop: start=0, step=1, limit=2
    $region10: #{tpu_custom_call.1} parent=1 // loop_pre_header
      _
    $region11: #{tpu_custom_call.1} parent=1 // loop_header
      %s23 = sphi 0, %s27
      %p24 = scmp.ge.s32.totalorder %s23, 2
      %v28 = vphi %v19, %v299
      %v29 = vphi %v20, %v310
    $region12: #{tpu_custom_call.1} parent=1 // loop_header_branch
      %26 = sbr.rel (%p24) target = $region16
    $region13: #{tpu_custom_call.1} parent=1 // loop_body
      %s30 = smul.u32 %s23, 8
      %s31 = scalar_lea.vmem %s0, %s30
      %v32 = vld [vmem:[%s31] sm:$0xff]
      %s33 = sadd.s32 %s21, %s30
      %s34 = sadd.s32 %s33, 1
      %s35 = scvt.s32.f32 %s34
      %v36 = vstv %s35
      %v37 = vrcp.pop %v36
      %v38 = vmul.f32 %v36, %v37
      %v39 = vsub.f32 1.0, %v38
      %v40 = vmul.f32 %v37, %v39
      %v41 = vadd.f32 %v37, %v40
      %vm42 = vweird.f32 %v36
      %vm43 = vweird.f32 %v37
      %vm44 = vmor %vm42, %vm43
      %v45 = vsel %vm44, %v37, %v41
      %v46 = vand.u32 2147483647, %v36
      %vm47 = vcmp.eq.f32.partialorder %v46, 8.507059e+37
      %v48 = vand.u32 %v36, 2147483648
      %v49 = vor.u32 1.1754944e-38, %v48
      %v50 = vsel %vm47, %v49, %v45
      %s51 = vtos %v50
      %v52 = vadd.f32 %v28, %v32
      %v53 = vstv %s51
      %v54 = vmul.f32 %v52, %v53
      %v55 = vsub.f32 %v32, %v54
      %v56 = vmul.f32 %v55, %v55
      %v57 = vadd.f32 %v29, %v56
      %s58 = sadd.s32 %s33, 2
      %s59 = scvt.s32.f32 %s58
      %v60 = vstv %s59
      %v61 = vrcp.pop %v60
      %v62 = vmul.f32 %v60, %v61
      %v63 = vsub.f32 1.0, %v62
      %v64 = vmul.f32 %v61, %v63
      %v65 = vadd.f32 %v61, %v64
      %vm66 = vweird.f32 %v60
      %vm67 = vweird.f32 %v61
      %vm68 = vmor %vm66, %vm67
      %v69 = vsel %vm68, %v61, %v65
      %v70 = vand.u32 2147483647, %v60
      %vm71 = vcmp.eq.f32.partialorder %v70, 8.507059e+37
      %v72 = vand.u32 %v60, 2147483648
      %v73 = vor.u32 1.1754944e-38, %v72
      %v74 = vsel %vm71, %v73, %v69
      %s75 = vtos %v74
      %77 = vst [vmem:[#allocation1] sm:$0xff] %v32
      %s78 = scalar_lea.vmem [#allocation1], 1
      %v79 = vld [vmem:[%s78] ss:$9 sm:$0xff]
      %v81 = vadd.f32 %v54, %v79
      %v82 = vstv %s75
      %v83 = vmul.f32 %v81, %v82
      %v85 = vperm.slane %v83, 0
      %v87 = vsub.f32 %v32, %v85
      %v88 = vmul.f32 %v87, %v87
      %90 = vst [vmem:[#allocation1] sm:$0xff] %v88
      %s91 = scalar_lea.vmem [#allocation1], 1
      %v92 = vld [vmem:[%s91] ss:$9 sm:$0xff]
      %v94 = vadd.f32 %v57, %v92
      %s95 = sadd.s32 %s33, 3
      %s96 = scvt.s32.f32 %s95
      %v97 = vstv %s96
      %v98 = vrcp.pop %v97
      %v99 = vmul.f32 %v97, %v98
      %v100 = vsub.f32 1.0, %v99
      %v101 = vmul.f32 %v98, %v100
      %v102 = vadd.f32 %v98, %v101
      %vm103 = vweird.f32 %v97
      %vm104 = vweird.f32 %v98
      %vm105 = vmor %vm103, %vm104
      %v106 = vsel %vm105, %v98, %v102
      %v107 = vand.u32 2147483647, %v97
      %vm108 = vcmp.eq.f32.partialorder %v107, 8.507059e+37
      %v109 = vand.u32 %v97, 2147483648
      %v110 = vor.u32 1.1754944e-38, %v109
      %v111 = vsel %vm108, %v110, %v106
      %s112 = vtos %v111
      %113 = vst [vmem:[#allocation1] sm:$0xff] %v32
      %s114 = scalar_lea.vmem [#allocation1], 2
      %v115 = vld [vmem:[%s114] ss:$9 sm:$0xff]
      %v117 = vadd.f32 %v83, %v115
      %v118 = vstv %s112
      %v119 = vmul.f32 %v117, %v118
      %v121 = vperm.slane %v119, 0
      %v123 = vsub.f32 %v32, %v121
      %v124 = vmul.f32 %v123, %v123
      %126 = vst [vmem:[#allocation1] sm:$0xff] %v124
      %s127 = scalar_lea.vmem [#allocation1], 2
      %v128 = vld [vmem:[%s127] ss:$9 sm:$0xff]
      %v130 = vadd.f32 %v94, %v128
      %s131 = sadd.s32 %s33, 4
      %s132 = scvt.s32.f32 %s131
      %v133 = vstv %s132
      %v134 = vrcp.pop %v133
      %v135 = vmul.f32 %v133, %v134
      %v136 = vsub.f32 1.0, %v135
      %v137 = vmul.f32 %v134, %v136
      %v138 = vadd.f32 %v134, %v137
      %vm139 = vweird.f32 %v133
      %vm140 = vweird.f32 %v134
      %vm141 = vmor %vm139, %vm140
      %v142 = vsel %vm141, %v134, %v138
      %v143 = vand.u32 2147483647, %v133
      %vm144 = vcmp.eq.f32.partialorder %v143, 8.507059e+37
      %v145 = vand.u32 %v133, 2147483648
      %v146 = vor.u32 1.1754944e-38, %v145
      %v147 = vsel %vm144, %v146, %v142
      %s148 = vtos %v147
      %149 = vst [vmem:[#allocation1] sm:$0xff] %v32
      %s150 = scalar_lea.vmem [#allocation1], 3
      %v151 = vld [vmem:[%s150] ss:$9 sm:$0xff]
      %v153 = vadd.f32 %v119, %v151
      %v154 = vstv %s148
      %v155 = vmul.f32 %v153, %v154
      %v157 = vperm.slane %v155, 0
      %v159 = vsub.f32 %v32, %v157
      %v160 = vmul.f32 %v159, %v159
      %162 = vst [vmem:[#allocation1] sm:$0xff] %v160
      %s163 = scalar_lea.vmem [#allocation1], 3
      %v164 = vld [vmem:[%s163] ss:$9 sm:$0xff]
      %v166 = vadd.f32 %v130, %v164
      %s167 = sadd.s32 %s33, 5
      %s168 = scvt.s32.f32 %s167
      %v169 = vstv %s168
      %v170 = vrcp.pop %v169
      %v171 = vmul.f32 %v169, %v170
      %v172 = vsub.f32 1.0, %v171
      %v173 = vmul.f32 %v170, %v172
      %v174 = vadd.f32 %v170, %v173
      %vm175 = vweird.f32 %v169
      %vm176 = vweird.f32 %v170
      %vm177 = vmor %vm175, %vm176
      %v178 = vsel %vm177, %v170, %v174
      %v179 = vand.u32 2147483647, %v169
      %vm180 = vcmp.eq.f32.partialorder %v179, 8.507059e+37
      %v181 = vand.u32 %v169, 2147483648
      %v182 = vor.u32 1.1754944e-38, %v181
      %v183 = vsel %vm180, %v182, %v178
      %s184 = vtos %v183
      %185 = vst [vmem:[#allocation1] sm:$0xff] %v32
      %s186 = scalar_lea.vmem [#allocation1], 4
      %v187 = vld [vmem:[%s186] ss:$9 sm:$0xff]
      %v189 = vadd.f32 %v155, %v187
      %v190 = vstv %s184
      %v191 = vmul.f32 %v189, %v190
      %v193 = vperm.slane %v191, 0
      %v195 = vsub.f32 %v32, %v193
      %v196 = vmul.f32 %v195, %v195
      %198 = vst [vmem:[#allocation1] sm:$0xff] %v196
      %s199 = scalar_lea.vmem [#allocation1], 4
      %v200 = vld [vmem:[%s199] ss:$9 sm:$0xff]
      %v202 = vadd.f32 %v166, %v200
      %s203 = sadd.s32 %s33, 6
      %s204 = scvt.s32.f32 %s203
      %v205 = vstv %s204
      %v206 = vrcp.pop %v205
      %v207 = vmul.f32 %v205, %v206
      %v208 = vsub.f32 1.0, %v207
      %v209 = vmul.f32 %v206, %v208
      %v210 = vadd.f32 %v206, %v209
      %vm211 = vweird.f32 %v205
      %vm212 = vweird.f32 %v206
      %vm213 = vmor %vm211, %vm212
      %v214 = vsel %vm213, %v206, %v210
      %v215 = vand.u32 2147483647, %v205
      %vm216 = vcmp.eq.f32.partialorder %v215, 8.507059e+37
      %v217 = vand.u32 %v205, 2147483648
      %v218 = vor.u32 1.1754944e-38, %v217
      %v219 = vsel %vm216, %v218, %v214
      %s220 = vtos %v219
      %221 = vst [vmem:[#allocation1] sm:$0xff] %v32
      %s222 = scalar_lea.vmem [#allocation1], 5
      %v223 = vld [vmem:[%s222] ss:$9 sm:$0xff]
      %v225 = vadd.f32 %v191, %v223
      %v226 = vstv %s220
      %v227 = vmul.f32 %v225, %v226
      %v229 = vperm.slane %v227, 0
      %v231 = vsub.f32 %v32, %v229
      %v232 = vmul.f32 %v231, %v231
      %234 = vst [vmem:[#allocation1] sm:$0xff] %v232
      %s235 = scalar_lea.vmem [#allocation1], 5
      %v236 = vld [vmem:[%s235] ss:$9 sm:$0xff]
      %v238 = vadd.f32 %v202, %v236
      %s239 = sadd.s32 %s33, 7
      %s240 = scvt.s32.f32 %s239
      %v241 = vstv %s240
      %v242 = vrcp.pop %v241
      %v243 = vmul.f32 %v241, %v242
      %v244 = vsub.f32 1.0, %v243
      %v245 = vmul.f32 %v242, %v244
      %v246 = vadd.f32 %v242, %v245
      %vm247 = vweird.f32 %v241
      %vm248 = vweird.f32 %v242
      %vm249 = vmor %vm247, %vm248
      %v250 = vsel %vm249, %v242, %v246
      %v251 = vand.u32 2147483647, %v241
      %vm252 = vcmp.eq.f32.partialorder %v251, 8.507059e+37
      %v253 = vand.u32 %v241, 2147483648
      %v254 = vor.u32 1.1754944e-38, %v253
      %v255 = vsel %vm252, %v254, %v250
      %s256 = vtos %v255
      %257 = vst [vmem:[#allocation1] sm:$0xff] %v32
      %s258 = scalar_lea.vmem [#allocation1], 6
      %v259 = vld [vmem:[%s258] ss:$9 sm:$0xff]
      %v261 = vadd.f32 %v227, %v259
      %v262 = vstv %s256
      %v263 = vmul.f32 %v261, %v262
      %v265 = vperm.slane %v263, 0
      %v267 = vsub.f32 %v32, %v265
      %v268 = vmul.f32 %v267, %v267
      %270 = vst [vmem:[#allocation1] sm:$0xff] %v268
      %s271 = scalar_lea.vmem [#allocation1], 6
      %v272 = vld [vmem:[%s271] ss:$9 sm:$0xff]
      %v274 = vadd.f32 %v238, %v272
      %s275 = sadd.s32 %s33, 8
      %s276 = scvt.s32.f32 %s275
      %v277 = vstv %s276
      %v278 = vrcp.pop %v277
      %v279 = vmul.f32 %v277, %v278
      %v280 = vsub.f32 1.0, %v279
      %v281 = vmul.f32 %v278, %v280
      %v282 = vadd.f32 %v278, %v281
      %vm283 = vweird.f32 %v277
      %vm284 = vweird.f32 %v278
      %vm285 = vmor %vm283, %vm284
      %v286 = vsel %vm285, %v278, %v282
      %v287 = vand.u32 2147483647, %v277
      %vm288 = vcmp.eq.f32.partialorder %v287, 8.507059e+37
      %v289 = vand.u32 %v277, 2147483648
      %v290 = vor.u32 1.1754944e-38, %v289
      %v291 = vsel %vm288, %v290, %v286
      %s292 = vtos %v291
      %293 = vst [vmem:[#allocation1] sm:$0xff] %v32
      %s294 = scalar_lea.vmem [#allocation1], 7
      %v295 = vld [vmem:[%s294] ss:$9 sm:$0xff]
      %v297 = vadd.f32 %v263, %v295
      %v298 = vstv %s292
      %v299 = vmul.f32 %v297, %v298
      %v301 = vperm.slane %v299, 0
      %v303 = vsub.f32 %v32, %v301
      %v304 = vmul.f32 %v303, %v303
      %306 = vst [vmem:[#allocation1] sm:$0xff] %v304
      %s307 = scalar_lea.vmem [#allocation1], 7
      %v308 = vld [vmem:[%s307] ss:$9 sm:$0xff]
      %v310 = vadd.f32 %v274, %v308
    $region14: #{tpu_custom_call.1} parent=1 // loop_footer
      %s27 = sadd.s32 1, %s23
    $region15: #{tpu_custom_call.1} parent=1 // loop_footer_branch
      %22 = sbr.rel target = $region11
    $region16: #{tpu_custom_call.1} parent=1 // loop_exit
      _
    %vm311 = vcmask 57344
    %312 = vst.msk [vmem:[#allocation2] sm:$0x1] %vm311, %v28
    %313 = vst.msk [vmem:[#allocation3] sm:$0x1] %vm311, %v29
    // Predicated region
    $region17: #{tpu_custom_call.1} parent=1 // pred_check
      %p314 = pneg %p12
    $region18: #{tpu_custom_call.1} parent=1 // pred_check_branch
      %316 = sbr.rel (%p314) target = $region20
    $region19: #{tpu_custom_call.1} parent=1 // pred_region
      %v317 = vrcp.pop 15.0
      %v318 = vmul.f32 15.0, %v317
      %v319 = vsub.f32 1.0, %v318
      %v320 = vmul.f32 %v317, %v319
      %v321 = vadd.f32 %v317, %v320
      %vm322 = vweird.f32 %v317
      %v323 = vsel %vm322, %v317, %v321
      %v324 = vmul.f32 %v29, %v323
      %v325 = vadd.f32 %v324, 1e-05
      %v326 = vrsqrt.pop %v325
      %v327 = vmul.f32 %v326, %v325
      %v328 = vmul.f32 %v327, %v326
      %v329 = vmul.f32 0.5, %v328
      %v330 = vsub.f32 1.5, %v329
      %v331 = vmul.f32 %v326, %v330
      %v332 = vmul.f32 %v325, %v331
      %vm333 = vcmp.eq.f32.partialorder %v325, inf
      %v334 = vsel %vm333, %v325, %v332
      %vm335 = vcmp.eq.f32.partialorder %v325, 0.0
      %v336 = vand.u32 %v325, 2147483648
      %v337 = vsel %vm335, %v336, %v334
      %v338 = vrcp.pop %v337
      %v339 = vmul.f32 %v337, %v338
      %v340 = vsub.f32 1.0, %v339
      %v341 = vmul.f32 %v338, %v340
      %v342 = vadd.f32 %v338, %v341
      %vm343 = vweird.f32 %v337
      %vm344 = vweird.f32 %v338
      %vm345 = vmor %vm343, %vm344
      %v346 = vsel %vm345, %v338, %v342
      %v347 = vand.u32 2147483647, %v337
      %vm348 = vcmp.eq.f32.partialorder %v347, 8.507059e+37
      %v349 = vand.u32 %v337, 2147483648
      %v350 = vor.u32 1.1754944e-38, %v349
      %v351 = vsel %vm348, %v350, %v346
      %v352 = vmul.f32 0.5, %v351
      %353 = vst.msk [vmem:[#allocation4] sm:$0x1] %vm311, %v352
      %v354 = vmul.f32 %v28, %v352
      %v355 = vsub.f32 0.25, %v354
      %356 = vst.msk [vmem:[#allocation6] sm:$0x1] %vm311, %v355
    $region20: #{tpu_custom_call.1} parent=1 // pred_fallthru
      _
    // Predicated region
    $region21: #{tpu_custom_call.1} parent=1 // pred_check
      _
    $region22: #{tpu_custom_call.1} parent=1 // pred_check_branch
      %358 = sbr.rel (0) target = $region24
    $region23: #{tpu_custom_call.1} parent=1 // pred_region
      %360 = vsyncadd [#allocation5], 0
      %s362 = sshll.u32 [#allocation4], 4
      %s363 = int_to_ptr.vmem [resolvable:$true] %s362
      %s364 = sshll.u32 %s1, 4
      %s365 = int_to_ptr.hbm [resolvable:$true] %s364
      %367 = dma.vmem_to_hbm [thread:$0]  %s363, 16, %s365, [#allocation5]
    $region24: #{tpu_custom_call.1} parent=1 // pred_fallthru
      _
    // Predicated region
    $region25: #{tpu_custom_call.1} parent=1 // pred_check
      _
    $region26: #{tpu_custom_call.1} parent=1 // pred_check_branch
      %369 = sbr.rel (0) target = $region28
    $region27: #{tpu_custom_call.1} parent=1 // pred_region
      %371 = vsyncadd [#allocation7], 0
      %s373 = sshll.u32 [#allocation6], 4
      %s374 = int_to_ptr.vmem [resolvable:$true] %s373
      %s375 = sshll.u32 %s2, 4
      %s376 = int_to_ptr.hbm [resolvable:$true] %s375
      %378 = dma.vmem_to_hbm [thread:$0]  %s374, 16, %s376, [#allocation7]
    $region28: #{tpu_custom_call.1} parent=1 // pred_fallthru
      _
    // Predicated region
    $region29: #{tpu_custom_call.1} parent=1 // pred_check
      _
    $region30: #{tpu_custom_call.1} parent=1 // pred_check_branch
      %380 = sbr.rel (0) target = $region32
    $region31: #{tpu_custom_call.1} parent=1 // pred_region
      %382 = dma.done [#allocation5], 16
    $region32: #{tpu_custom_call.1} parent=1 // pred_fallthru
      _
    // Predicated region
    $region33: #{tpu_custom_call.1} parent=1 // pred_check
      _
    $region34: #{tpu_custom_call.1} parent=1 // pred_check_branch
      %384 = sbr.rel (0) target = $region36
    $region35: #{tpu_custom_call.1} parent=1 // pred_region
      %386 = dma.done [#allocation7], 16
    $region36: #{tpu_custom_call.1} parent=1 // pred_fallthru
      _
    %387 = vsyncpa [#allocation5], 1
    %388 = vsyncpa [#allocation7], 1

</llo_original>
